<compile_context>
chip_gen: v6e
topology: v6e:2x2x1
jax: 0.10.0
libtpu: 0.0.40
codegen_flags: <defaults>
</compile_context>

<pallas_src>
import functools

import jax
import jax.numpy as jnp
from jax.experimental import pallas as pl
from jax.experimental.pallas import tpu as pltpu


def _conv1x1_vpu_kernel(x_ref, w_ref, b_ref, o_ref, *, cin):
    # Small-channel path: Cin broadcast fused multiply-adds on the VPU.
    # Avoids pushing a degenerate-K (K = Cin <= 8) matmul through the MXU.
    x = x_ref[0].astype(jnp.float32)                      # (Cin, t_hw)
    w = w_ref[...].astype(jnp.float32)                    # (Cout, Cin)
    b = b_ref[...].astype(jnp.float32)                    # (Cout, 1)
    acc = w[:, 0:1] * x[0:1, :] + b                       # bias folded into init
    for c in range(1, cin):                               # static unroll, cin tiny
        acc = acc + w[:, c:c + 1] * x[c:c + 1, :]
    o_ref[0] = acc.astype(o_ref.dtype)


def _conv1x1_mxu_kernel(x_ref, w_ref, b_ref, o_ref):
    # General path: (Cout, Cin) @ (Cin, t_hw) on the MXU, f32 accumulate.
    acc = jnp.dot(w_ref[...], x_ref[0], preferred_element_type=jnp.float32)
    o_ref[0] = (acc + b_ref[...].astype(jnp.float32)).astype(o_ref.dtype)


def _choose_hw_tile(hw, cin, cout, itemsize, *, target=8192,
                    vmem_budget=20 * 1024 * 1024):
    """Pick the HW (lane) tile: as large as possible to amortize the ~0.35us
    per-grid-step overhead and keep DMAs long, a multiple of 128 for unmasked
    lane-dense stores, and small enough that the double-buffered in+out blocks
    fit a conservative VMEM budget (safe on v7x's 64 MiB physical VMEM)."""
    if hw <= 128:
        return hw                                    # full extent is legal
    per_elem = 2 * (cin + cout) * itemsize           # double-buffered x + out
    max_t = max(128, vmem_budget // max(per_elem, 1))
    t = min(target, hw, max_t)
    if t >= hw:
        return hw                                    # full extent is legal
    return max(128, (t // 128) * 128)


def conv1x1(x, weight, bias, *, hw_tile=None):
    """1x1 conv, PyTorch NCHW semantics.

    x:      (N, Cin, H, W)
    weight: (Cout, Cin, 1, 1)   -- nn.Conv2d weight layout
    bias:   (Cout,)
    returns (N, Cout, H, W)
    """
    N, Cin, H, W = x.shape
    Cout = weight.shape[0]
    HW = H * W
    itemsize = jnp.dtype(x.dtype).itemsize

    # Contiguous (free) reshapes only — no NCHW<->NHWC transposes.
    x3 = x.reshape(N, Cin, HW)                 # (N, Cin, HW)
    w2 = weight.reshape(Cout, Cin)             # (Cout, Cin)
    b2 = bias.reshape(Cout, 1)                 # (Cout, 1): lane-broadcast add

    t_hw = hw_tile if hw_tile is not None else _choose_hw_tile(
        HW, Cin, Cout, itemsize)

    grid = (N, pl.cdiv(HW, t_hw))

    if Cin <= 8:
        kernel = functools.partial(_conv1x1_vpu_kernel, cin=Cin)
    else:
        kernel = _conv1x1_mxu_kernel
    # TODO(synk): tile the weight over an extra Cout grid axis when
    # Cin*Cout*itemsize exceeds ~8-16 MiB (very large channel counts on v7x).

    # Double-buffered x/out blocks + resident weight/bias, with headroom.
    needed = 2 * ((Cin + Cout) * t_hw + Cin * Cout + Cout) * itemsize
    vmem_limit = int(min(max(2 * needed, 16 * 1024 * 1024), 48 * 1024 * 1024))

    out3 = pl.pallas_call(
        kernel,
        out_shape=jax.ShapeDtypeStruct((N, Cout, HW), x.dtype),
        grid_spec=pltpu.PrefetchScalarGridSpec(
            num_scalar_prefetch=0,
            grid=grid,
            in_specs=[
                # x block: (1, Cin, t_hw); Cin = full extent, t_hw lane-dense.
                pl.BlockSpec((1, Cin, t_hw), lambda n, j: (n, 0, j)),
                # Weight / bias: whole (tiny) arrays, resident across the grid.
                pl.BlockSpec((Cout, Cin), lambda n, j: (0, 0)),
                pl.BlockSpec((Cout, 1), lambda n, j: (0, 0)),
            ],
            out_specs=pl.BlockSpec((1, Cout, t_hw), lambda n, j: (n, 0, j)),
        ),
        compiler_params=pltpu.CompilerParams(
            dimension_semantics=("parallel", "parallel"),
            vmem_limit_bytes=vmem_limit,
        ),
    )(x3, w2, b2)

    return out3.reshape(N, Cout, H, W)


def _reference(x, weight, bias):
    Cout, Cin = weight.shape[0], weight.shape[1]
    return jnp.einsum("nchw,oc->nohw", x, weight.reshape(Cout, Cin),
                      precision=jax.lax.Precision.HIGHEST) \
        + bias.reshape(1, Cout, 1, 1)


if __name__ == "__main__":
    key = jax.random.PRNGKey(0)

    # --- Test 1: module defaults (inc=3, outc=3) -> VPU small-channel path.
    k_x, k_w, k_b, key = jax.random.split(key, 4)
    N, Cin, Cout, H, W = 2, 3, 3, 16, 16
    x = jax.random.normal(k_x, (N, Cin, H, W), dtype=jnp.float32)
    weight = jax.random.normal(k_w, (Cout, Cin, 1, 1), dtype=jnp.float32) * 0.1
    bias = jax.random.normal(k_b, (Cout,), dtype=jnp.float32) * 0.1

    out = conv1x1(x, weight, bias)
    jax.block_until_ready(out)
    ref = _reference(x, weight, bias)
    assert out.shape == (N, Cout, H, W)
    assert jnp.allclose(out, ref, atol=1e-4, rtol=1e-5), "mismatch (VPU path)"

    # --- Test 2: larger channels -> MXU matmul path.
    k_x2, k_w2, k_b2, key = jax.random.split(key, 4)
    N2, C2, H2, W2 = 2, 64, 16, 16
    x2 = jax.random.normal(k_x2, (N2, C2, H2, W2), dtype=jnp.float32)
    w2 = jax.random.normal(k_w2, (C2, C2, 1, 1), dtype=jnp.float32) * 0.1
    b2 = jax.random.normal(k_b2, (C2,), dtype=jnp.float32) * 0.1

    out2 = conv1x1(x2, w2, b2)
    jax.block_until_ready(out2)
    ref2 = _reference(x2, w2, b2)
    assert out2.shape == (N2, C2, H2, W2)
    assert jnp.allclose(out2, ref2, atol=1e-4, rtol=1e-5), "mismatch (MXU path)"

    # --- Test 3: non-square spatial with HW tiling exercised (HW > tile).
    k_x3, key = jax.random.split(key, 2)
    x3 = jax.random.normal(k_x3, (1, 3, 8, 40), dtype=jnp.float32)
    out3 = conv1x1(x3, weight, bias, hw_tile=128)     # HW=320 -> partial tail tile
    jax.block_until_ready(out3)
    ref3 = _reference(x3, weight, bias)
    assert jnp.allclose(out3, ref3, atol=1e-4, rtol=1e-5), "mismatch (tiled path)"

    print("KERNEL_OK")
</pallas_src>

<mosaic_0001>
module attributes {stable_mosaic.version = 11 : i64} {
  func.func @_conv1x1_vpu_kernel(%arg0: i32, %arg1: i32, %arg2: memref<1x3x256xf32, #tpu.memory_space<vmem>>, %arg3: memref<3x3xf32, #tpu.memory_space<vmem>>, %arg4: memref<3x1xf32, #tpu.memory_space<vmem>>, %arg5: memref<1x3x256xf32, #tpu.memory_space<vmem>>) attributes {dimension_semantics = [#tpu.dimension_semantics<parallel>, #tpu.dimension_semantics<parallel>], iteration_bounds = array<i64: 2, 1>, scalar_prefetch = 0 : i64, scratch_operands = 0 : i64, tpu.core_type = #tpu.core_type<tc>, window_params = [{transform_indices = @transform_0, window_bounds = array<i64: 1, 3, 256>}, {pipeline_mode = #tpu.pipeline_mode<synchronous>, transform_indices = @transform_1, window_bounds = array<i64: 3, 3>}, {pipeline_mode = #tpu.pipeline_mode<synchronous>, transform_indices = @transform_2, window_bounds = array<i64: 3, 1>}, {transform_indices = @transform_3, window_bounds = array<i64: 1, 3, 256>}]} {
    %c0 = arith.constant 0 : index
    %c0_0 = arith.constant 0 : index
    %c0_1 = arith.constant 0 : index
    %0 = vector.load %arg2[%c0, %c0_0, %c0_1] : memref<1x3x256xf32, #tpu.memory_space<vmem>>, vector<1x3x256xf32>
    %1 = vector.shape_cast %0 : vector<1x3x256xf32> to vector<3x256xf32>
    %c0_2 = arith.constant 0 : index
    %c0_3 = arith.constant 0 : index
    %2 = vector.load %arg3[%c0_2, %c0_3] : memref<3x3xf32, #tpu.memory_space<vmem>>, vector<3x3xf32>
    %c0_4 = arith.constant 0 : index
    %c0_5 = arith.constant 0 : index
    %3 = vector.load %arg4[%c0_4, %c0_5] : memref<3x1xf32, #tpu.memory_space<vmem>>, vector<3x1xf32>
    %4 = vector.extract_strided_slice %2 {offsets = [0, 0], sizes = [3, 1], strides = [1, 1]} : vector<3x3xf32> to vector<3x1xf32>
    %5 = vector.extract_strided_slice %1 {offsets = [0, 0], sizes = [1, 256], strides = [1, 1]} : vector<3x256xf32> to vector<1x256xf32>
    %6 = vector.broadcast %4 : vector<3x1xf32> to vector<3x256xf32>
    %7 = vector.broadcast %5 : vector<1x256xf32> to vector<3x256xf32>
    %8 = arith.mulf %6, %7 : vector<3x256xf32>
    %9 = vector.broadcast %3 : vector<3x1xf32> to vector<3x256xf32>
    %10 = arith.addf %8, %9 : vector<3x256xf32>
    %11 = vector.extract_strided_slice %2 {offsets = [0, 1], sizes = [3, 1], strides = [1, 1]} : vector<3x3xf32> to vector<3x1xf32>
    %12 = vector.extract_strided_slice %1 {offsets = [1, 0], sizes = [1, 256], strides = [1, 1]} : vector<3x256xf32> to vector<1x256xf32>
    %13 = vector.broadcast %11 : vector<3x1xf32> to vector<3x256xf32>
    %14 = vector.broadcast %12 : vector<1x256xf32> to vector<3x256xf32>
    %15 = arith.mulf %13, %14 : vector<3x256xf32>
    %16 = arith.addf %10, %15 : vector<3x256xf32>
    %17 = vector.extract_strided_slice %2 {offsets = [0, 2], sizes = [3, 1], strides = [1, 1]} : vector<3x3xf32> to vector<3x1xf32>
    %18 = vector.extract_strided_slice %1 {offsets = [2, 0], sizes = [1, 256], strides = [1, 1]} : vector<3x256xf32> to vector<1x256xf32>
    %19 = vector.broadcast %17 : vector<3x1xf32> to vector<3x256xf32>
    %20 = vector.broadcast %18 : vector<1x256xf32> to vector<3x256xf32>
    %21 = arith.mulf %19, %20 : vector<3x256xf32>
    %22 = arith.addf %16, %21 : vector<3x256xf32>
    %c0_6 = arith.constant 0 : index
    %c0_7 = arith.constant 0 : index
    %c0_8 = arith.constant 0 : index
    %23 = vector.load %arg5[%c0_6, %c0_7, %c0_8] : memref<1x3x256xf32, #tpu.memory_space<vmem>>, vector<1x3x256xf32>
    %24 = vector.shape_cast %23 : vector<1x3x256xf32> to vector<3x256xf32>
    %25 = vector.shape_cast %22 : vector<3x256xf32> to vector<1x3x256xf32>
    tpu.vector_store %arg5[%c0_6, %c0_7, %c0_8], %25 {strides = array<i32>} : memref<1x3x256xf32, #tpu.memory_space<vmem>>, vector<1x3x256xf32>,
    return
  }
  func.func @transform_0(%arg0: i32, %arg1: i32) -> (i32, i32, i32) {
    %c0_i32 = arith.constant 0 : i32
    %c0_i32_0 = arith.constant 0 : i32
    return %arg0, %c0_i32, %arg1 : i32, i32, i32
  }
  func.func @transform_1(%arg0: i32, %arg1: i32) -> (i32, i32) {
    %c0_i32 = arith.constant 0 : i32
    %c0_i32_0 = arith.constant 0 : i32
    %c0_i32_1 = arith.constant 0 : i32
    return %c0_i32, %c0_i32_0 : i32, i32
  }
  func.func @transform_2(%arg0: i32, %arg1: i32) -> (i32, i32) {
    %c0_i32 = arith.constant 0 : i32
    %c0_i32_0 = arith.constant 0 : i32
    %c0_i32_1 = arith.constant 0 : i32
    return %c0_i32, %c0_i32_0 : i32, i32
  }
  func.func @transform_3(%arg0: i32, %arg1: i32) -> (i32, i32, i32) {
    %c0_i32 = arith.constant 0 : i32
    %c0_i32_0 = arith.constant 0 : i32
    return %arg0, %c0_i32, %arg1 : i32, i32, i32
  }
}

</mosaic_0001>

<llo_original>
// kernel: tpu_custom_call.1
$region0: #{tpu_custom_call.1}
  #allocation0 [shape = 'u32[]', space=smem, size = 0x4, offset = 0x4, fixed_abs, tag = 'smem constant byte address 0x4 - core index']
  #allocation1 [shape = 'u32[144,128]{1,0:T(1,128)}', space=vmem, size = 0x12000, scoped, tag = 'internal scratch']
  %s0 = inlined_call_operand.vmem [shape: f32[2,3,256], index: 0, kind: input, shape index: {}]
  %s1 = inlined_call_operand.vmem [shape: f32[3,3], index: 1, kind: input, shape index: {}]
  %s2 = inlined_call_operand.vmem [shape: f32[3,1], index: 2, kind: input, shape index: {}]
  %s3 = inlined_call_operand.vmem [shape: f32[2,3,256], index: 3, kind: output, shape index: {}]
  %s4 = sld [smem:[#allocation0]]
  $region45: #{tpu_custom_call.1} parent=0
    _
  %s6 = ssub.s32 1, %s4
  %s7 = scalar_select 0, %s6, %s4
  loop: start=0, step=1, limit=4
  $region2: #{tpu_custom_call.1} parent=0 // loop_pre_header
    _
  $region3: #{tpu_custom_call.1} parent=0 // loop_header
    %s9 = sphi 0, %s13
    %p10 = scmp.ge.s32.totalorder %s9, 4
    %s16 = sphi 0, %s28
    %s17 = sphi 0, %s24
    %s18 = sphi 0, %s16
    %s19 = sphi 0, %s17
    %s20 = sphi 0, %s18
    %s21 = sphi 0, %s19
    %s33 = sphi 0, %s35
    %s36 = sphi 0, %s33
    %s37 = sphi 0, %s36
    %s53 = sphi 0, %s37
    %s57 = sphi 0, %s57
    %s59 = sphi 0, %s57
    %s60 = sphi 0, %s59
    %s74 = sphi 0, %s60
    %s78 = sphi 0, %s78
    %s80 = sphi 0, %s78
    %s81 = sphi 0, %s80
    %s95 = sphi 0, %s81
    %s103 = sphi 0, %s105
    %s106 = sphi 0, %s103
    %s107 = sphi 0, %s106
    %s123 = sphi 0, %s107
  $region4: #{tpu_custom_call.1} parent=0 // loop_header_branch
    %12 = sbr.rel (%p10) target = $region8
  $region5: #{tpu_custom_call.1} parent=0 // loop_body
    %s14 = ssub.s32 %s9, 1
    %s15 = ssub.s32 %s9, 2
    %s22 = sadd.s32 1, %s17
    %p23 = scmp.ge.s32.totalorder %s22, 1
    %s24 = scalar_select %p23, 0, %s22
    %s25 = sadd.s32 1, %s16
    %s26 = scalar_select %p23, %s25, %s16
    %p27 = scmp.ge.s32.totalorder %s26, 2
    %s28 = scalar_select %p27, 0, %s26
    %s29 = ssub.s32 %s16, %s28
    %s30 = ssub.s32 %s17, %s24
    %s31 = sor.u32 %s29, %s30
    %p32 = scmp.eq.s32.totalorder %s31, 0
    %s34 = sadd.s32 %s33, 1
    %s35 = scalar_select %p32, %s33, %s34
    %p38 = pneg %p32
    %p39 = scmp.eq.s32.totalorder %s9, 1
    %p40 = por %p38, %p39
    %p41 = scmp.ne.s32.totalorder %s33, %s36
    %p42 = scmp.eq.s32.totalorder %s9, 0
    %p43 = por %p41, %p42
    %p44 = scmp.ne.s32.totalorder %s33, %s36
    %p45 = scmp.eq.s32.totalorder %s14, 1
    %p46 = por %p44, %p45
    %p47 = scmp.ne.s32.totalorder %s36, %s37
    %p48 = scmp.eq.s32.totalorder %s14, 0
    %p49 = por %p47, %p48
    %p50 = scmp.ne.s32.totalorder %s36, %s37
    %p51 = scmp.eq.s32.totalorder %s15, 1
    %p52 = por %p50, %p51
    %p54 = scmp.ne.s32.totalorder %s37, %s53
    %p55 = scmp.eq.s32.totalorder %s15, 0
    %p56 = por %p54, %p55
    %s58 = sadd.s32 %s57, 1
    %p61 = scmp.eq.s32.totalorder %s9, 1
    %p62 = scmp.ne.s32.totalorder %s57, %s59
    %p63 = scmp.eq.s32.totalorder %s9, 0
    %p64 = por %p62, %p63
    %p65 = scmp.ne.s32.totalorder %s57, %s59
    %p66 = scmp.eq.s32.totalorder %s14, 1
    %p67 = por %p65, %p66
    %p68 = scmp.ne.s32.totalorder %s59, %s60
    %p69 = scmp.eq.s32.totalorder %s14, 0
    %p70 = por %p68, %p69
    %p71 = scmp.ne.s32.totalorder %s59, %s60
    %p72 = scmp.eq.s32.totalorder %s15, 1
    %p73 = por %p71, %p72
    %p75 = scmp.ne.s32.totalorder %s60, %s74
    %p76 = scmp.eq.s32.totalorder %s15, 0
    %p77 = por %p75, %p76
    %s79 = sadd.s32 %s78, 1
    %p82 = scmp.eq.s32.totalorder %s9, 1
    %p83 = scmp.ne.s32.totalorder %s78, %s80
    %p84 = scmp.eq.s32.totalorder %s9, 0
    %p85 = por %p83, %p84
    %p86 = scmp.ne.s32.totalorder %s78, %s80
    %p87 = scmp.eq.s32.totalorder %s14, 1
    %p88 = por %p86, %p87
    %p89 = scmp.ne.s32.totalorder %s80, %s81
    %p90 = scmp.eq.s32.totalorder %s14, 0
    %p91 = por %p89, %p90
    %p92 = scmp.ne.s32.totalorder %s80, %s81
    %p93 = scmp.eq.s32.totalorder %s15, 1
    %p94 = por %p92, %p93
    %p96 = scmp.ne.s32.totalorder %s81, %s95
    %p97 = scmp.eq.s32.totalorder %s15, 0
    %p98 = por %p96, %p97
    %s99 = ssub.s32 %s16, %s28
    %s100 = ssub.s32 %s17, %s24
    %s101 = sor.u32 %s99, %s100
    %p102 = scmp.eq.s32.totalorder %s101, 0
    %s104 = sadd.s32 %s103, 1
    %s105 = scalar_select %p102, %s103, %s104
    %p108 = pneg %p102
    %p109 = scmp.eq.s32.totalorder %s9, 1
    %p110 = por %p108, %p109
    %p111 = scmp.ne.s32.totalorder %s103, %s106
    %p112 = scmp.eq.s32.totalorder %s9, 0
    %p113 = por %p111, %p112
    %p114 = scmp.ne.s32.totalorder %s103, %s106
    %p115 = scmp.eq.s32.totalorder %s14, 1
    %p116 = por %p114, %p115
    %p117 = scmp.ne.s32.totalorder %s106, %s107
    %p118 = scmp.eq.s32.totalorder %s14, 0
    %p119 = por %p117, %p118
    %p120 = scmp.ne.s32.totalorder %s106, %s107
    %p121 = scmp.eq.s32.totalorder %s15, 1
    %p122 = por %p120, %p121
    %p124 = scmp.ne.s32.totalorder %s107, %s123
    %p125 = scmp.eq.s32.totalorder %s15, 0
    %p126 = por %p124, %p125
    %p127 = scmp.le.s32.totalorder 1, %s9
    %p128 = scmp.lt.s32.totalorder %s9, 3
    %p129 = pnand %p127, %p128
    %p130 = pneg %p129
    // Predicated region
    $region9: #{tpu_custom_call.1} parent=5 // pred_check
      _
    $region10: #{tpu_custom_call.1} parent=5 // pred_check_branch
      %132 = sbr.rel (%p129) target = $region12
    $region11: #{tpu_custom_call.1} parent=5 // pred_region
      %s133 = ssub.s32 %s9, 1
      // Predicated region
      $region13: #{tpu_custom_call.1} parent=11 // pred_check
        %p134 = pneg %p70
      $region14: #{tpu_custom_call.1} parent=11 // pred_check_branch
        %136 = sbr.rel (%p134) target = $region16
      $region15: #{tpu_custom_call.1} parent=11 // pred_region
        _
      $region16: #{tpu_custom_call.1} parent=11 // pred_fallthru
        _
      // Predicated region
      $region17: #{tpu_custom_call.1} parent=11 // pred_check
        %p137 = pneg %p91
      $region18: #{tpu_custom_call.1} parent=11 // pred_check_branch
        %139 = sbr.rel (%p137) target = $region20
      $region19: #{tpu_custom_call.1} parent=11 // pred_region
        _
      $region20: #{tpu_custom_call.1} parent=11 // pred_fallthru
        _
    $region12: #{tpu_custom_call.1} parent=5 // pred_fallthru
      _
    %p140 = scmp.lt.s32.totalorder %s9, 2
    // Predicated region
    $region21: #{tpu_custom_call.1} parent=5 // pred_check
      %p141 = pneg %p140
    $region22: #{tpu_custom_call.1} parent=5 // pred_check_branch
      %143 = sbr.rel (%p141) target = $region24
    $region23: #{tpu_custom_call.1} parent=5 // pred_region
      // Predicated region
      $region25: #{tpu_custom_call.1} parent=23 // pred_check
        %p144 = pneg %p43
      $region26: #{tpu_custom_call.1} parent=23 // pred_check_branch
        %146 = sbr.rel (%p144) target = $region28
      $region27: #{tpu_custom_call.1} parent=23 // pred_region
        %s147 = smul.u32 2, %s17
        %p148 = scmp.lt.s32.totalorder %s16, 1
        %s149 = scalar_select %p148, %s16, 1
        %p150 = scmp.lt.s32.totalorder %s147, 1
        %s151 = scalar_select %p150, %s147, 1
        %s152 = smul.addr %s149, 2
        %s153 = sadd.s32 %s151, %s152
        %s154 = smul.addr %s153, 4
        %s155 = scalar_lea.vmem %s0, %s154
        %s156 = smul.u32 2, %s17
      $region28: #{tpu_custom_call.1} parent=23 // pred_fallthru
        _
    $region24: #{tpu_custom_call.1} parent=5 // pred_fallthru
      _
    %p157 = scmp.le.s32.totalorder 1, %s9
    %p158 = scmp.lt.s32.totalorder %s9, 3
    %p159 = pnand %p157, %p158
    %p160 = pneg %p159
    // Predicated region
    $region29: #{tpu_custom_call.1} parent=5 // pred_check
      _
    $region30: #{tpu_custom_call.1} parent=5 // pred_check_branch
      %162 = sbr.rel (%p159) target = $region32
    $region31: #{tpu_custom_call.1} parent=5 // pred_region
      %s163 = ssub.s32 %s9, 1
      %s164 = smul.u32 2, %s19
      %p165 = scmp.lt.s32.totalorder %s18, 1
      %s166 = scalar_select %p165, %s18, 1
      %p167 = scmp.lt.s32.totalorder %s164, 1
      %s168 = scalar_select %p167, %s164, 1
      %s169 = smul.addr %s166, 2
      %s170 = sadd.s32 %s168, %s169
      %s171 = smul.addr %s170, 4
      %s172 = scalar_lea.vmem %s0, %s171
      %p173 = pneg %p49
      %p174 = pneg %p46
      %p175 = pneg %p70
      %p176 = pneg %p67
      %p177 = pneg %p91
      %p178 = pneg %p88
      %p179 = pneg %p119
      %p180 = pneg %p116
      %s181 = smul.u32 2, %s19
      %p182 = scmp.lt.s32.totalorder %s18, 1
      %s183 = scalar_select %p182, %s18, 1
      %p184 = scmp.lt.s32.totalorder %s181, 1
      %s185 = scalar_select %p184, %s181, 1
      %s186 = smul.addr %s183, 2
      %s187 = sadd.s32 %s185, %s186
      %s188 = smul.addr %s187, 4
      %s189 = scalar_lea.vmem %s3, %s188
      %s190 = smul.u32 2, %s19
      %p191 = scmp.lt.s32.totalorder %s18, 1
      %s192 = scalar_select %p191, %s18, 1
      %p193 = scmp.lt.s32.totalorder %s190, 1
      %s194 = scalar_select %p193, %s190, 1
      %s195 = smul.addr %s192, 2
      %s196 = sadd.s32 %s194, %s195
      %s197 = smul.addr %s196, 4
      %s198 = scalar_lea.vmem %s0, %s197
      %s199 = smul.u32 2, %s19
      %s200 = smul.u32 2, %s19
      %p201 = scmp.lt.s32.totalorder %s18, 1
      %s202 = scalar_select %p201, %s18, 1
      %p203 = scmp.lt.s32.totalorder %s200, 1
      %s204 = scalar_select %p203, %s200, 1
      %s205 = smul.addr %s202, 2
      %s206 = sadd.s32 %s204, %s205
      %s207 = smul.addr %s206, 4
      %s208 = scalar_lea.vmem %s3, %s207
      %s209 = smul.u32 2, %s19
      %v210 = vld [vmem:[%s198] sm:$0x77]
      %v211 = vld [vmem:[%s1] sm:$0x7]
      %v212 = vld [vmem:[%s2] sm:$0x7]
      %214 = vset.pattern.permute.xlu0 0
      %215 = vperm.xlu0 %214, %v211
      %v216 = vpop.permute.xlu0 %215
      %v219 = vlaneseq
      %v220 = vshrl.u32 %v219, 7
      %v221 = vsub.s32 0, %v220
      %v222 = vrot.slane %v210, %v221
      %v223 = vlaneseq
      %v224 = vshrl.u32 %v223, 7
      %v225 = vsub.s32 4, %v224
      %v226 = vrot.slane %v210, %v225
      %v229 = vlaneseq
      %v230 = vshrl.u32 %v229, 7
      %v231 = vsub.s32 0, %v230
      %v232 = vrot.slane %v222, %v231
      %v233 = vlaneseq
      %v234 = vshrl.u32 %v233, 7
      %v235 = vsub.s32 0, %v234
      %v236 = vrot.slane %v226, %v235
      %v237 = vmul.f32 %v216, %v232
      %v238 = vmul.f32 %v216, %v236
      %240 = vset.pattern.permute.xlu0 0
      %241 = vperm.xlu0 %240, %v212
      %v242 = vpop.permute.xlu0 %241
      %v244 = vadd.f32 %v237, %v242
      %v245 = vadd.f32 %v238, %v242
      %246 = vset.pattern.permute.xlu0 1
      %247 = vperm.xlu0 %246, %v211
      %v248 = vpop.permute.xlu0 %247
      %v250 = vlaneseq
      %v251 = vshrl.u32 %v250, 7
      %v252 = vsub.s32 1, %v251
      %v253 = vrot.slane %v210, %v252
      %v254 = vlaneseq
      %v255 = vshrl.u32 %v254, 7
      %v256 = vsub.s32 5, %v255
      %v257 = vrot.slane %v210, %v256
      %v260 = vlaneseq
      %v261 = vshrl.u32 %v260, 7
      %v262 = vsub.s32 1, %v261
      %v263 = vrot.slane %v253, %v262
      %v264 = vlaneseq
      %v265 = vshrl.u32 %v264, 7
      %v266 = vsub.s32 1, %v265
      %v267 = vrot.slane %v257, %v266
      %v268 = vmul.f32 %v248, %v263
      %v269 = vmul.f32 %v248, %v267
      %v270 = vadd.f32 %v244, %v268
      %v271 = vadd.f32 %v245, %v269
      %272 = vset.pattern.permute.xlu0 2
      %273 = vperm.xlu0 %272, %v211
      %v274 = vpop.permute.xlu0 %273
      %v276 = vlaneseq
      %v277 = vshrl.u32 %v276, 7
      %v278 = vsub.s32 2, %v277
      %v279 = vrot.slane %v210, %v278
      %v280 = vlaneseq
      %v281 = vshrl.u32 %v280, 7
      %v282 = vsub.s32 6, %v281
      %v283 = vrot.slane %v210, %v282
      %v286 = vlaneseq
      %v287 = vshrl.u32 %v286, 7
      %v288 = vsub.s32 2, %v287
      %v289 = vrot.slane %v279, %v288
      %v290 = vlaneseq
      %v291 = vshrl.u32 %v290, 7
      %v292 = vsub.s32 2, %v291
      %v293 = vrot.slane %v283, %v292
      %v294 = vmul.f32 %v274, %v289
      %v295 = vmul.f32 %v274, %v293
      %v296 = vadd.f32 %v270, %v294
      %v297 = vadd.f32 %v271, %v295
      %v300 = vcombine.low %v296, %v297
      %302 = vst [vmem:[%s208] sm:$0x77] %v300
      %s303 = smul.u32 2, %s19
      %p304 = scmp.lt.s32.totalorder %s18, 1
      %s305 = scalar_select %p304, %s18, 1
      %p306 = scmp.lt.s32.totalorder %s303, 1
      %s307 = scalar_select %p306, %s303, 1
      %s308 = smul.addr %s305, 2
      %s309 = sadd.s32 %s307, %s308
      %s310 = smul.addr %s309, 4
      %s311 = scalar_lea.vmem %s3, %s310
      // Predicated region
      $region33: #{tpu_custom_call.1} parent=31 // pred_check
        %p312 = pneg %p116
      $region34: #{tpu_custom_call.1} parent=31 // pred_check_branch
        %314 = sbr.rel (%p312) target = $region36
      $region35: #{tpu_custom_call.1} parent=31 // pred_region
        %s315 = smul.u32 2, %s19
      $region36: #{tpu_custom_call.1} parent=31 // pred_fallthru
        _
    $region32: #{tpu_custom_call.1} parent=5 // pred_fallthru
      _
    %p316 = scmp.le.s32.totalorder 2, %s9
    // Predicated region
    $region37: #{tpu_custom_call.1} parent=5 // pred_check
      %p317 = pneg %p316
    $region38: #{tpu_custom_call.1} parent=5 // pred_check_branch
      %319 = sbr.rel (%p317) target = $region40
    $region39: #{tpu_custom_call.1} parent=5 // pred_region
      %s320 = ssub.s32 %s9, 2
      // Predicated region
      $region41: #{tpu_custom_call.1} parent=39 // pred_check
        %p321 = pneg %p122
      $region42: #{tpu_custom_call.1} parent=39 // pred_check_branch
        %323 = sbr.rel (%p321) target = $region44
      $region43: #{tpu_custom_call.1} parent=39 // pred_region
        %s324 = smul.u32 2, %s21
        %p325 = scmp.lt.s32.totalorder %s20, 1
        %s326 = scalar_select %p325, %s20, 1
        %p327 = scmp.lt.s32.totalorder %s324, 1
        %s328 = scalar_select %p327, %s324, 1
        %s329 = smul.addr %s326, 2
        %s330 = sadd.s32 %s328, %s329
        %s331 = smul.addr %s330, 4
        %s332 = scalar_lea.vmem %s3, %s331
      $region44: #{tpu_custom_call.1} parent=39 // pred_fallthru
        _
    $region40: #{tpu_custom_call.1} parent=5 // pred_fallthru
      _
  $region6: #{tpu_custom_call.1} parent=0 // loop_footer
    %s13 = sadd.s32 1, %s9
  $region7: #{tpu_custom_call.1} parent=0 // loop_footer_branch
    %8 = sbr.rel target = $region3
  $region8: #{tpu_custom_call.1} parent=0 // loop_exit
    _

</llo_original>
